<compile_context>
chip_gen: v7x
topology: tpu7x:2x2x1
jax: 0.10.0
libtpu: 0.0.40
codegen_flags: <defaults>
</compile_context>

<pallas_src>
import functools
import math

import jax
import jax.numpy as jnp
from jax.experimental import pallas as pl
from jax.experimental.pallas import tpu as pltpu


def _round_up(n: int, m: int) -> int:
    return ((n + m - 1) // m) * m


def _cdiv(a: int, b: int) -> int:
    return (a + b - 1) // b


def _make_kernel(n_hidden: int):
    """Kernel body for a fixed number of hidden layers.

    Ref order: x, [w0, b0, w1, b1, ...], wf, bf, out
      x  : (TB, in_f)         bf16  (real feature width, unpadded)
      wK : (k_pad, out_pad)   bf16  (pre-transposed: y = x @ W, lane-padded)
      bK : (1, out_pad)       f32
      out: (TB, C_pad)        bf16
    """

    def kernel(*refs):
        x_ref = refs[0]
        out_ref = refs[-1]
        idx = 1

        x = x_ref[...]  # bf16 activations
        for _ in range(n_hidden):
            w_ref, b_ref = refs[idx], refs[idx + 1]
            idx += 2
            h = (
                jnp.dot(x, w_ref[...], preferred_element_type=jnp.float32)
                + b_ref[...]
            )
            x = jnp.maximum(h, 0.0).astype(jnp.bfloat16)

        wf_ref, bf_ref = refs[idx], refs[idx + 1]
        logits = (
            jnp.dot(x, wf_ref[...], preferred_element_type=jnp.float32)
            + bf_ref[...]
        )

        # Numerically-stable softmax over classes. Padded class lanes carry a
        # -1e30 bias -> exp underflows to exactly 0, so they don't perturb
        # max/sum. Exact division keeps row sums == 1 (approx recip did not).
        m = jnp.max(logits, axis=1, keepdims=True)
        e = jnp.exp(logits - m)
        denom = jnp.sum(e, axis=1, keepdims=True)
        out_ref[...] = (e / denom).astype(out_ref.dtype)

    return kernel


def prepare_params(params, in_features: int, num_classes: int):
    """One-time prep: pad every layer's output (lane) dim to a multiple of 128,
    pad K dims to the previous layer's padded width, cast weights to bf16.
    Keep biases in f32 (VPU/softmax math stays f32)."""
    prev_pad = in_features  # first layer sees the real, unpadded feature width

    hidden_p = []
    for w, b in params["hidden"]:
        k, n = w.shape
        n_p = _round_up(n, 128)
        w_p = jnp.pad(w.astype(jnp.bfloat16), ((0, prev_pad - k), (0, n_p - n)))
        b_p = jnp.pad(b.astype(jnp.float32), ((0, 0), (0, n_p - n)))
        hidden_p.append((w_p, b_p))
        prev_pad = n_p

    wf, bf = params["fc"]
    k, c = wf.shape
    c_p = _round_up(num_classes, 128)
    wf_p = jnp.pad(wf.astype(jnp.bfloat16), ((0, prev_pad - k), (0, c_p - c)))
    # Padded class lanes get -1e30 so softmax assigns them ~0 probability.
    bf_p = jnp.pad(
        bf.astype(jnp.float32), ((0, 0), (0, c_p - c)), constant_values=-1e30
    )
    return {"hidden": hidden_p, "fc": (wf_p, bf_p)}


@functools.partial(jax.jit, static_argnames=("num_classes", "max_tile"))
def emg_forward(emg, prepped, num_classes, max_tile=1024):
    """emg: (B, *input_shape_emg). Returns (B, num_classes) softmax probs (bf16)."""
    B = emg.shape[0]
    x = emg.reshape(B, -1).astype(jnp.bfloat16)  # nn.Flatten + MXU input dtype
    in_f = x.shape[1]

    # ---- batch tiling -------------------------------------------------------
    # Minimize batch padding (<= 7 wasted rows) and, for B >= 16, keep >= 2
    # grid steps so the "parallel" batch axis can shard across both
    # TensorCores on v7x.
    num_tiles = max(_cdiv(B, max_tile), 2 if B >= 16 else 1)
    TB = _round_up(_cdiv(B, num_tiles), 8)
    B_pad = _round_up(B, TB)
    if B_pad > B:
        x = jnp.pad(x, ((0, B_pad - B), (0, 0)))

    hidden = prepped["hidden"]
    wf, bf = prepped["fc"]
    C_p = wf.shape[1]

    kernel_inputs = [x]
    # Real feature width as the block's last dim (block == full array dim).
    in_specs = [pl.BlockSpec((TB, in_f), lambda i: (i, 0))]

    flops = 0
    param_bytes = 0
    for w, b in hidden:
        kernel_inputs += [w, b]
        in_specs += [
            pl.BlockSpec(w.shape, lambda i: (0, 0)),  # VMEM-resident weight
            pl.BlockSpec(b.shape, lambda i: (0, 0)),
        ]
        flops += 2 * B_pad * w.shape[0] * w.shape[1]
        param_bytes += w.size * w.dtype.itemsize + b.size * b.dtype.itemsize

    kernel_inputs += [wf, bf]
    in_specs += [
        pl.BlockSpec(wf.shape, lambda i: (0, 0)),
        pl.BlockSpec(bf.shape, lambda i: (0, 0)),
    ]
    flops += 2 * B_pad * wf.shape[0] * wf.shape[1]
    param_bytes += wf.size * wf.dtype.itemsize + bf.size * bf.dtype.itemsize

    bytes_accessed = x.size * 2 + B_pad * C_p * 2 + param_bytes

    out_padded = pl.pallas_call(
        _make_kernel(len(hidden)),
        out_shape=jax.ShapeDtypeStruct((B_pad, C_p), jnp.bfloat16),
        grid=(B_pad // TB,),
        in_specs=in_specs,
        out_specs=pl.BlockSpec((TB, C_p), lambda i: (i, 0)),
        compiler_params=pltpu.CompilerParams(
            dimension_semantics=("parallel",),  # shard batch axis across TCs (v7x)
            vmem_limit_bytes=32 * 1024 * 1024,  # plenty; safe on v5e/v6e/v7x
        ),
        cost_estimate=pl.CostEstimate(
            flops=flops,
            transcendentals=B_pad * C_p,
            bytes_accessed=bytes_accessed,
        ),
    )(*kernel_inputs)

    return out_padded[:B, :num_classes]


def init_params(key, in_features, hidden_sizes, num_classes):
    """Deterministic synthetic parameters matching nn.Linear init (U(-1/sqrt(fan_in), ...))."""

    def linear(k, fan_in, fan_out):
        kw, kb = jax.random.split(k)
        s = 1.0 / math.sqrt(fan_in)
        w = jax.random.uniform(kw, (fan_in, fan_out), jnp.float32, -s, s)
        b = jax.random.uniform(kb, (1, fan_out), jnp.float32, -s, s)
        return w, b

    keys = jax.random.split(key, len(hidden_sizes) + 1)
    hidden = []
    fan_in = in_features
    for i, h in enumerate(hidden_sizes):
        hidden.append(linear(keys[i], fan_in, h))
        fan_in = h
    fc = linear(keys[-1], fan_in, num_classes)
    return {"hidden": hidden, "fc": fc}


def reference_forward(emg, params):
    """Pure-JAX reference mirroring the PyTorch forward (same bf16-MXU numerics)."""
    B = emg.shape[0]
    x = emg.reshape(B, -1)
    for w, b in params["hidden"]:
        x = jnp.maximum(
            jnp.dot(
                x.astype(jnp.bfloat16),
                w.astype(jnp.bfloat16),
                preferred_element_type=jnp.float32,
            )
            + b,
            0.0,
        )
    wf, bf = params["fc"]
    logits = (
        jnp.dot(
            x.astype(jnp.bfloat16),
            wf.astype(jnp.bfloat16),
            preferred_element_type=jnp.float32,
        )
        + bf
    )
    return jax.nn.softmax(logits, axis=1)


if __name__ == "__main__":
    # Shapes consistent with the module: emg (B, 4, 16) -> flatten 64 features.
    input_shape_emg = (4, 16)
    hidden_sizes_emg = (64, 32)
    num_classes = 8
    B = 8

    key = jax.random.PRNGKey(0)
    k_x, k_p = jax.random.split(key)

    emg = jax.random.normal(k_x, (B,) + input_shape_emg, jnp.float32)
    in_features = input_shape_emg[0] * input_shape_emg[1]
    params = init_params(
        k_p,
        in_features=in_features,
        hidden_sizes=hidden_sizes_emg,
        num_classes=num_classes,
    )

    # One-time parameter prep (padding + bf16 cast hoisted out of the forward).
    prepped = prepare_params(params, in_features, num_classes)

    out = emg_forward(emg, prepped, num_classes)
    out = jax.block_until_ready(out)

    out_f32 = out.astype(jnp.float32)
    ref = reference_forward(emg, params)

    assert out.shape == (B, num_classes)
    # bf16 output quantization: per-element abs error <= ~2e-3, row-sum error <= ~2e-3.
    assert jnp.allclose(out_f32, ref, atol=8e-3, rtol=0), "mismatch vs JAX reference"
    assert jnp.allclose(
        jnp.sum(out_f32, axis=1), 1.0, atol=1e-2
    ), "softmax rows must sum to 1"

    print("KERNEL_OK")
</pallas_src>

<mosaic_0001>
module attributes {stable_mosaic.version = 11 : i64} {
  func.func @kernel(%arg0: i32, %arg1: memref<8x64xbf16, #tpu.memory_space<vmem>>, %arg2: memref<64x128xbf16, #tpu.memory_space<vmem>>, %arg3: memref<1x128xf32, #tpu.memory_space<vmem>>, %arg4: memref<128x128xbf16, #tpu.memory_space<vmem>>, %arg5: memref<1x128xf32, #tpu.memory_space<vmem>>, %arg6: memref<128x128xbf16, #tpu.memory_space<vmem>>, %arg7: memref<1x128xf32, #tpu.memory_space<vmem>>, %arg8: memref<8x128xbf16, #tpu.memory_space<vmem>>) attributes {dimension_semantics = [#tpu.dimension_semantics<parallel>], iteration_bounds = array<i64: 1>, scalar_prefetch = 0 : i64, scratch_operands = 0 : i64, tpu.core_type = #tpu.core_type<tc>, window_params = [{transform_indices = @transform_0, window_bounds = array<i64: 8, 64>}, {pipeline_mode = #tpu.pipeline_mode<synchronous>, transform_indices = @transform_1, window_bounds = array<i64: 64, 128>}, {pipeline_mode = #tpu.pipeline_mode<synchronous>, transform_indices = @transform_2, window_bounds = array<i64: 1, 128>}, {pipeline_mode = #tpu.pipeline_mode<synchronous>, transform_indices = @transform_3, window_bounds = array<i64: 128, 128>}, {pipeline_mode = #tpu.pipeline_mode<synchronous>, transform_indices = @transform_4, window_bounds = array<i64: 1, 128>}, {pipeline_mode = #tpu.pipeline_mode<synchronous>, transform_indices = @transform_5, window_bounds = array<i64: 128, 128>}, {pipeline_mode = #tpu.pipeline_mode<synchronous>, transform_indices = @transform_6, window_bounds = array<i64: 1, 128>}, {transform_indices = @transform_7, window_bounds = array<i64: 8, 128>}]} {
    %c0 = arith.constant 0 : index
    %c0_0 = arith.constant 0 : index
    %0 = vector.load %arg1[%c0, %c0_0] : memref<8x64xbf16, #tpu.memory_space<vmem>>, vector<8x64xbf16>
    %c0_1 = arith.constant 0 : index
    %c0_2 = arith.constant 0 : index
    %1 = vector.load %arg2[%c0_1, %c0_2] : memref<64x128xbf16, #tpu.memory_space<vmem>>, vector<64x128xbf16>
    %cst = arith.constant dense<0.000000e+00> : vector<8x128xf32>
    %2 = tpu.matmul %0, %1, %cst {dimension_numbers = #tpu.dot_dimension_numbers<[1], [0], [0], [1], [0, 0, 1, 1], [], []>} : vector<8x64xbf16>, vector<64x128xbf16>, vector<8x128xf32> -> vector<8x128xf32>
    %c0_3 = arith.constant 0 : index
    %c0_4 = arith.constant 0 : index
    %3 = vector.load %arg3[%c0_3, %c0_4] : memref<1x128xf32, #tpu.memory_space<vmem>>, vector<1x128xf32>
    %4 = vector.broadcast %3 : vector<1x128xf32> to vector<8x128xf32>
    %5 = arith.addf %2, %4 : vector<8x128xf32>
    %cst_5 = arith.constant 0.000000e+00 : f32
    %6 = vector.broadcast %cst_5 : f32 to vector<8x128xf32>
    %7 = arith.maximumf %5, %6 : vector<8x128xf32>
    %8 = arith.truncf %7 : vector<8x128xf32> to vector<8x128xbf16>
    %c0_6 = arith.constant 0 : index
    %c0_7 = arith.constant 0 : index
    %9 = vector.load %arg4[%c0_6, %c0_7] : memref<128x128xbf16, #tpu.memory_space<vmem>>, vector<128x128xbf16>
    %cst_8 = arith.constant dense<0.000000e+00> : vector<8x128xf32>
    %10 = tpu.matmul %8, %9, %cst_8 {dimension_numbers = #tpu.dot_dimension_numbers<[1], [0], [0], [1], [0, 0, 1, 1], [], []>} : vector<8x128xbf16>, vector<128x128xbf16>, vector<8x128xf32> -> vector<8x128xf32>
    %c0_9 = arith.constant 0 : index
    %c0_10 = arith.constant 0 : index
    %11 = vector.load %arg5[%c0_9, %c0_10] : memref<1x128xf32, #tpu.memory_space<vmem>>, vector<1x128xf32>
    %12 = vector.broadcast %11 : vector<1x128xf32> to vector<8x128xf32>
    %13 = arith.addf %10, %12 : vector<8x128xf32>
    %cst_11 = arith.constant 0.000000e+00 : f32
    %14 = vector.broadcast %cst_11 : f32 to vector<8x128xf32>
    %15 = arith.maximumf %13, %14 : vector<8x128xf32>
    %16 = arith.truncf %15 : vector<8x128xf32> to vector<8x128xbf16>
    %c0_12 = arith.constant 0 : index
    %c0_13 = arith.constant 0 : index
    %17 = vector.load %arg6[%c0_12, %c0_13] : memref<128x128xbf16, #tpu.memory_space<vmem>>, vector<128x128xbf16>
    %cst_14 = arith.constant dense<0.000000e+00> : vector<8x128xf32>
    %18 = tpu.matmul %16, %17, %cst_14 {dimension_numbers = #tpu.dot_dimension_numbers<[1], [0], [0], [1], [0, 0, 1, 1], [], []>} : vector<8x128xbf16>, vector<128x128xbf16>, vector<8x128xf32> -> vector<8x128xf32>
    %c0_15 = arith.constant 0 : index
    %c0_16 = arith.constant 0 : index
    %19 = vector.load %arg7[%c0_15, %c0_16] : memref<1x128xf32, #tpu.memory_space<vmem>>, vector<1x128xf32>
    %20 = vector.broadcast %19 : vector<1x128xf32> to vector<8x128xf32>
    %21 = arith.addf %18, %20 : vector<8x128xf32>
    %cst_17 = arith.constant dense<0xFF800000> : vector<8xf32>
    %22 = vector.multi_reduction <maximumf>, %21, %cst_17 [1] : vector<8x128xf32> to vector<8xf32>
    %23 = vector.shape_cast %22 : vector<8xf32> to vector<8x1xf32>
    %24 = vector.broadcast %23 : vector<8x1xf32> to vector<8x128xf32>
    %25 = arith.subf %21, %24 : vector<8x128xf32>
    %26 = math.exp %25 : vector<8x128xf32>
    %cst_18 = arith.constant dense<0.000000e+00> : vector<8xf32>
    %27 = vector.multi_reduction <add>, %26, %cst_18 [1] : vector<8x128xf32> to vector<8xf32>
    %28 = vector.shape_cast %27 : vector<8xf32> to vector<8x1xf32>
    %29 = vector.broadcast %28 : vector<8x1xf32> to vector<8x128xf32>
    %30 = arith.divf %26, %29 : vector<8x128xf32>
    %31 = arith.truncf %30 : vector<8x128xf32> to vector<8x128xbf16>
    %c0_19 = arith.constant 0 : index
    %c0_20 = arith.constant 0 : index
    %32 = vector.load %arg8[%c0_19, %c0_20] : memref<8x128xbf16, #tpu.memory_space<vmem>>, vector<8x128xbf16>
    tpu.vector_store %arg8[%c0_19, %c0_20], %31 {strides = array<i32>} : memref<8x128xbf16, #tpu.memory_space<vmem>>, vector<8x128xbf16>,
    return
  }
  func.func @transform_0(%arg0: i32) -> (i32, i32) {
    %c0_i32 = arith.constant 0 : i32
    %c0_i32_0 = arith.constant 0 : i32
    return %arg0, %c0_i32 : i32, i32
  }
  func.func @transform_1(%arg0: i32) -> (i32, i32) {
    %c0_i32 = arith.constant 0 : i32
    %c0_i32_0 = arith.constant 0 : i32
    %c0_i32_1 = arith.constant 0 : i32
    return %c0_i32, %c0_i32_0 : i32, i32
  }
  func.func @transform_2(%arg0: i32) -> (i32, i32) {
    %c0_i32 = arith.constant 0 : i32
    %c0_i32_0 = arith.constant 0 : i32
    %c0_i32_1 = arith.constant 0 : i32
    return %c0_i32, %c0_i32_0 : i32, i32
  }
  func.func @transform_3(%arg0: i32) -> (i32, i32) {
    %c0_i32 = arith.constant 0 : i32
    %c0_i32_0 = arith.constant 0 : i32
    %c0_i32_1 = arith.constant 0 : i32
    return %c0_i32, %c0_i32_0 : i32, i32
  }
  func.func @transform_4(%arg0: i32) -> (i32, i32) {
    %c0_i32 = arith.constant 0 : i32
    %c0_i32_0 = arith.constant 0 : i32
    %c0_i32_1 = arith.constant 0 : i32
    return %c0_i32, %c0_i32_0 : i32, i32
  }
  func.func @transform_5(%arg0: i32) -> (i32, i32) {
    %c0_i32 = arith.constant 0 : i32
    %c0_i32_0 = arith.constant 0 : i32
    %c0_i32_1 = arith.constant 0 : i32
    return %c0_i32, %c0_i32_0 : i32, i32
  }
  func.func @transform_6(%arg0: i32) -> (i32, i32) {
    %c0_i32 = arith.constant 0 : i32
    %c0_i32_0 = arith.constant 0 : i32
    %c0_i32_1 = arith.constant 0 : i32
    return %c0_i32, %c0_i32_0 : i32, i32
  }
  func.func @transform_7(%arg0: i32) -> (i32, i32) {
    %c0_i32 = arith.constant 0 : i32
    %c0_i32_0 = arith.constant 0 : i32
    return %arg0, %c0_i32 : i32, i32
  }
}

</mosaic_0001>

<llo_original>
// kernel: emg_forward.1
$region0: #{emg_forward.1}
  #allocation0 [shape = 'u32[]', space=smem, size = 0x4, offset = 0x4, fixed_abs, tag = 'smem constant byte address 0x4 - core index']
  #allocation1 [shape = 'u32[144,128]{1,0:T(1,128)}', space=vmem, size = 0x12000, scoped, tag = 'internal scratch']
  %s0 = inlined_call_operand.vmem [shape: bf16[8,64], index: 0, kind: input, shape index: {}]
  %s1 = inlined_call_operand.hbm [shape: bf16[64,128], index: 1, kind: input, shape index: {}]
  %s2 = inlined_call_operand.vmem [shape: f32[1,128], index: 2, kind: input, shape index: {}]
  %s3 = inlined_call_operand.vmem [shape: bf16[128,128], index: 3, kind: input, shape index: {}]
  %s4 = inlined_call_operand.vmem [shape: f32[1,128], index: 4, kind: input, shape index: {}]
  %s5 = inlined_call_operand.hbm [shape: bf16[128,128], index: 5, kind: input, shape index: {}]
  %s6 = inlined_call_operand.vmem [shape: f32[1,128], index: 6, kind: input, shape index: {}]
  %s7 = inlined_call_operand.hbm [shape: bf16[8,128], index: 7, kind: output, shape index: {}]
  %s8 = sld [smem:[#allocation0]]
  $region46: #{emg_forward.1} parent=0
    _
  %s10 = ssub.s32 1, %s8
  %s11 = scalar_select 0, %s10, %s8
  $region1: #{emg_forward.1} parent=0
    #allocation2 [shape = 'u8[16384]{0}', space=vmem, size = 0x4000, scoped, tag = 'input window, operand 1, single buffered']
    #allocation3 [shape = 's32[1]{0}', space=sflag, size = 0x4, scoped, tag = 'scoped memory for emg_forward.1']
    #allocation4 [shape = 's32[1]{0}', space=sflag, size = 0x4, scoped, tag = 'scoped memory for emg_forward.1']
    #allocation5 [shape = 'u8[32768]{0}', space=vmem, size = 0x8000, scoped, tag = 'input window, operand 5, single buffered']
    #allocation6 [shape = 's32[1]{0}', space=sflag, size = 0x4, scoped, tag = 'scoped memory for emg_forward.1']
    #allocation7 [shape = 'u8[2048]{0}', space=vmem, size = 0x800, scoped, tag = 'output window, operand 0, single buffered']
    %12 = vsyncpa [#allocation3], 0
    %13 = vsyncpa [#allocation6], 0
    %14 = vsyncpa [#allocation4], 0
    // Predicated region
    $region2: #{emg_forward.1} parent=1 // pred_check
      _
    $region3: #{emg_forward.1} parent=1 // pred_check_branch
      %16 = sbr.rel (0) target = $region5
    $region4: #{emg_forward.1} parent=1 // pred_region
      _
    $region5: #{emg_forward.1} parent=1 // pred_fallthru
      _
    // Predicated region
    $region6: #{emg_forward.1} parent=1 // pred_check
      _
    $region7: #{emg_forward.1} parent=1 // pred_check_branch
      %18 = sbr.rel (0) target = $region9
    $region8: #{emg_forward.1} parent=1 // pred_region
      %s20 = ssub.s32 512, 512
      %21 = vsyncadd [#allocation3], %s20
      %s22 = sshll.u32 [#allocation2], 4
      %s23 = int_to_ptr.vmem [resolvable:$true] %s22
      %28 = dma.hbm_to_vmem [thread:$0]  %s1, 512, %s23, [#allocation3], 64, 64, 4
    $region9: #{emg_forward.1} parent=1 // pred_fallthru
      _
    // Predicated region
    $region10: #{emg_forward.1} parent=1 // pred_check
      _
    $region11: #{emg_forward.1} parent=1 // pred_check_branch
      %30 = sbr.rel (0) target = $region13
    $region12: #{emg_forward.1} parent=1 // pred_region
      _
    $region13: #{emg_forward.1} parent=1 // pred_fallthru
      _
    // Predicated region
    $region14: #{emg_forward.1} parent=1 // pred_check
      _
    $region15: #{emg_forward.1} parent=1 // pred_check_branch
      %32 = sbr.rel (0) target = $region17
    $region16: #{emg_forward.1} parent=1 // pred_region
      _
    $region17: #{emg_forward.1} parent=1 // pred_fallthru
      _
    // Predicated region
    $region18: #{emg_forward.1} parent=1 // pred_check
      _
    $region19: #{emg_forward.1} parent=1 // pred_check_branch
      %34 = sbr.rel (0) target = $region21
    $region20: #{emg_forward.1} parent=1 // pred_region
      _
    $region21: #{emg_forward.1} parent=1 // pred_fallthru
      _
    // Predicated region
    $region22: #{emg_forward.1} parent=1 // pred_check
      _
    $region23: #{emg_forward.1} parent=1 // pred_check_branch
      %36 = sbr.rel (0) target = $region25
    $region24: #{emg_forward.1} parent=1 // pred_region
      %s38 = ssub.s32 1024, 1024
      %39 = vsyncadd [#allocation6], %s38
      %s40 = sshll.u32 [#allocation5], 4
      %s41 = int_to_ptr.vmem [resolvable:$true] %s40
      %46 = dma.hbm_to_vmem [thread:$0]  %s5, 1024, %s41, [#allocation6], 64, 64, 4
    $region25: #{emg_forward.1} parent=1 // pred_fallthru
      _
    // Predicated region
    $region26: #{emg_forward.1} parent=1 // pred_check
      _
    $region27: #{emg_forward.1} parent=1 // pred_check_branch
      %48 = sbr.rel (0) target = $region29
    $region28: #{emg_forward.1} parent=1 // pred_region
      _
    $region29: #{emg_forward.1} parent=1 // pred_fallthru
      _
    // Predicated region
    $region30: #{emg_forward.1} parent=1 // pred_check
      _
    $region31: #{emg_forward.1} parent=1 // pred_check_branch
      %50 = sbr.rel (0) target = $region33
    $region32: #{emg_forward.1} parent=1 // pred_region
      %51 = dma.done [#allocation3], 512
    $region33: #{emg_forward.1} parent=1 // pred_fallthru
      _
    // Predicated region
    $region34: #{emg_forward.1} parent=1 // pred_check
      _
    $region35: #{emg_forward.1} parent=1 // pred_check_branch
      %53 = sbr.rel (0) target = $region37
    $region36: #{emg_forward.1} parent=1 // pred_region
      %54 = dma.done [#allocation6], 1024
    $region37: #{emg_forward.1} parent=1 // pred_fallthru
      _
    %v56 = vld [vmem:[%s0] sm:$0xf]
    %v57 = vld [vmem:[#allocation2] sm:$0xf]
    %v58 = vld [vmem:[#allocation2 + $0x4] sm:$0xf]
    %v59 = vld [vmem:[#allocation2 + $0x8] sm:$0xf]
    %v60 = vld [vmem:[#allocation2 + $0xc] sm:$0xf]
    %v61 = vld [vmem:[#allocation2 + $0x10] sm:$0xf]
    %v62 = vld [vmem:[#allocation2 + $0x14] sm:$0xf]
    %v63 = vld [vmem:[#allocation2 + $0x18] sm:$0xf]
    %v64 = vld [vmem:[#allocation2 + $0x1c] sm:$0xf]
    %v65 = vld [vmem:[%s2] sm:$0x1]
    %v67 = vlaneseq
    %v68 = vshrl.u32 %v67, 7
    %v69 = vsub.s32 0, %v68
    %v70 = vrot.slane %v65, %v69
    %v80 = vunpack.c.l.b16 %v57
    %v81 = vunpack.c.l.b16 %v58
    %v82 = vunpack.c.l.b16 %v59
    %v83 = vunpack.c.l.b16 %v60
    %v84 = vunpack.c.l.b16 %v61
    %v85 = vunpack.c.l.b16 %v62
    %v86 = vunpack.c.l.b16 %v63
    %v87 = vunpack.c.l.b16 %v64
    %v88 = vpack.c.b16 %v81, %v80
    %v89 = vpack.c.b16 %v83, %v82
    %v90 = vpack.c.b16 %v85, %v84
    %v91 = vpack.c.b16 %v87, %v86
    %vm96 = vcmask 523264
    %v98 = vsel %vm96, %v56, 0
    %100 = vmatprep.subr.bf16.mxu0 0
    %101 = vmatpush1.bf16.msra.mxu0 %v88
    %102 = vmatprep.subr.bf16.mxu0 0
    %103 = vmatpush1.bf16.msra.mxu0 %v89
    %104 = vmatprep.subr.bf16.mxu0 0
    %105 = vmatpush1.bf16.msra.mxu0 %v90
    %106 = vmatprep.subr.bf16.mxu0 0
    %107 = vmatpush1.bf16.msra.mxu0 %v91
    %108 = vmatprep.subr.bf16.mxu0 0
    %109 = vmatpush1.bf16.msra.mxu0 0
    %110 = vmatprep.subr.bf16.mxu0 0
    %111 = vmatpush1.bf16.msra.mxu0 0
    %112 = vmatprep.subr.bf16.mxu0 0
    %113 = vmatpush1.bf16.msra.mxu0 0
    %114 = vmatprep.subr.bf16.mxu0 0
    %115 = vmatpush1.bf16.msra.mxu0 0
    %116 = vmatprep.subr.bf16.mxu0 0
    %117 = vmatpush1.bf16.msra.mxu0 0
    %118 = vmatprep.subr.bf16.mxu0 0
    %119 = vmatpush1.bf16.msra.mxu0 0
    %120 = vmatprep.subr.bf16.mxu0 0
    %121 = vmatpush1.bf16.msra.mxu0 0
    %122 = vmatprep.subr.bf16.mxu0 0
    %123 = vmatpush1.bf16.msra.mxu0 0
    %124 = vmatprep.subr.bf16.mxu0 0
    %125 = vmatpush1.bf16.msra.mxu0 0
    %126 = vmatprep.subr.bf16.mxu0 0
    %127 = vmatpush1.bf16.msra.mxu0 0
    %128 = vmatprep.subr.bf16.mxu0 0
    %129 = vmatpush1.bf16.msra.mxu0 0
    %130 = vmatprep.subr.bf16.mxu0 0
    %131 = vmatpush1.bf16.msra.mxu0 0
    %132 = vmatprep.mubr.bf16.mxu0 0
    %133 = vmatmul.mubr.bf16.gmra.mrb[0].mxu0 %v98
    %v134 = vpop.f32.mrb[0].mxu0
    %v135 = vadd.f32 %v70, %v134
    %v136 = vpop.f32.mrb[0].mxu0
    %v137 = vpop.f32.mrb[0].mxu0
    %v138 = vpop.f32.mrb[0].mxu0
    %139 = vdwg.mxu0
    %v140 = vmax.f32 %v135, 0.0
    %v141 = vpack.c.bf16 %v140, %v140
    %v142 = vld [vmem:[%s3] sm:$0xf]
    %v143 = vld [vmem:[%s3 + $0x4] sm:$0xf]
    %v144 = vld [vmem:[%s3 + $0x8] sm:$0xf]
    %v145 = vld [vmem:[%s3 + $0xc] sm:$0xf]
    %v146 = vld [vmem:[%s3 + $0x10] sm:$0xf]
    %v147 = vld [vmem:[%s3 + $0x14] sm:$0xf]
    %v148 = vld [vmem:[%s3 + $0x18] sm:$0xf]
    %v149 = vld [vmem:[%s3 + $0x1c] sm:$0xf]
    %v150 = vld [vmem:[%s3 + $0x20] sm:$0xf]
    %v151 = vld [vmem:[%s3 + $0x24] sm:$0xf]
    %v152 = vld [vmem:[%s3 + $0x28] sm:$0xf]
    %v153 = vld [vmem:[%s3 + $0x2c] sm:$0xf]
    %v154 = vld [vmem:[%s3 + $0x30] sm:$0xf]
    %v155 = vld [vmem:[%s3 + $0x34] sm:$0xf]
    %v156 = vld [vmem:[%s3 + $0x38] sm:$0xf]
    %v157 = vld [vmem:[%s3 + $0x3c] sm:$0xf]
    %v158 = vld [vmem:[%s4] sm:$0x1]
    %v160 = vlaneseq
    %v161 = vshrl.u32 %v160, 7
    %v162 = vsub.s32 0, %v161
    %v163 = vrot.slane %v158, %v162
    %v181 = vunpack.c.l.b16 %v142
    %v182 = vunpack.c.l.b16 %v143
    %v183 = vunpack.c.l.b16 %v144
    %v184 = vunpack.c.l.b16 %v145
    %v185 = vunpack.c.l.b16 %v146
    %v186 = vunpack.c.l.b16 %v147
    %v187 = vunpack.c.l.b16 %v148
    %v188 = vunpack.c.l.b16 %v149
    %v189 = vunpack.c.l.b16 %v150
    %v190 = vunpack.c.l.b16 %v151
    %v191 = vunpack.c.l.b16 %v152
    %v192 = vunpack.c.l.b16 %v153
    %v193 = vunpack.c.l.b16 %v154
    %v194 = vunpack.c.l.b16 %v155
    %v195 = vunpack.c.l.b16 %v156
    %v196 = vunpack.c.l.b16 %v157
    %v197 = vpack.c.b16 %v182, %v181
    %v198 = vpack.c.b16 %v184, %v183
    %v199 = vpack.c.b16 %v186, %v185
    %v200 = vpack.c.b16 %v188, %v187
    %v201 = vpack.c.b16 %v190, %v189
    %v202 = vpack.c.b16 %v192, %v191
    %v203 = vpack.c.b16 %v194, %v193
    %v204 = vpack.c.b16 %v196, %v195
    %213 = vmatprep.subr.bf16.mxu0 0
    %214 = vmatpush1.bf16.msra.mxu0 %v197
    %215 = vmatprep.subr.bf16.mxu0 0
    %216 = vmatpush1.bf16.msra.mxu0 %v198
    %217 = vmatprep.subr.bf16.mxu0 0
    %218 = vmatpush1.bf16.msra.mxu0 %v199
    %219 = vmatprep.subr.bf16.mxu0 0
    %220 = vmatpush1.bf16.msra.mxu0 %v200
    %221 = vmatprep.subr.bf16.mxu0 0
    %222 = vmatpush1.bf16.msra.mxu0 %v201
    %223 = vmatprep.subr.bf16.mxu0 0
    %224 = vmatpush1.bf16.msra.mxu0 %v202
    %225 = vmatprep.subr.bf16.mxu0 0
    %226 = vmatpush1.bf16.msra.mxu0 %v203
    %227 = vmatprep.subr.bf16.mxu0 0
    %228 = vmatpush1.bf16.msra.mxu0 %v204
    %229 = vmatprep.subr.bf16.mxu0 0
    %230 = vmatpush1.bf16.msra.mxu0 0
    %231 = vmatprep.subr.bf16.mxu0 0
    %232 = vmatpush1.bf16.msra.mxu0 0
    %233 = vmatprep.subr.bf16.mxu0 0
    %234 = vmatpush1.bf16.msra.mxu0 0
    %235 = vmatprep.subr.bf16.mxu0 0
    %236 = vmatpush1.bf16.msra.mxu0 0
    %237 = vmatprep.subr.bf16.mxu0 0
    %238 = vmatpush1.bf16.msra.mxu0 0
    %239 = vmatprep.subr.bf16.mxu0 0
    %240 = vmatpush1.bf16.msra.mxu0 0
    %241 = vmatprep.subr.bf16.mxu0 0
    %242 = vmatpush1.bf16.msra.mxu0 0
    %243 = vmatprep.subr.bf16.mxu0 0
    %244 = vmatpush1.bf16.msra.mxu0 0
    %245 = vmatprep.mubr.bf16.mxu0 0
    %246 = vmatmul.mubr.bf16.gmra.mrb[0].mxu0 %v141
    %v247 = vpop.f32.mrb[0].mxu0
    %v248 = vadd.f32 %v163, %v247
    %v249 = vpop.f32.mrb[0].mxu0
    %v250 = vpop.f32.mrb[0].mxu0
    %v251 = vpop.f32.mrb[0].mxu0
    %252 = vdwg.mxu0
    %v253 = vmax.f32 %v248, 0.0
    %v254 = vpack.c.bf16 %v253, %v253
    %v255 = vld [vmem:[#allocation5] sm:$0xf]
    %v256 = vld [vmem:[#allocation5 + $0x4] sm:$0xf]
    %v257 = vld [vmem:[#allocation5 + $0x8] sm:$0xf]
    %v258 = vld [vmem:[#allocation5 + $0xc] sm:$0xf]
    %v259 = vld [vmem:[#allocation5 + $0x10] sm:$0xf]
    %v260 = vld [vmem:[#allocation5 + $0x14] sm:$0xf]
    %v261 = vld [vmem:[#allocation5 + $0x18] sm:$0xf]
    %v262 = vld [vmem:[#allocation5 + $0x1c] sm:$0xf]
    %v263 = vld [vmem:[#allocation5 + $0x20] sm:$0xf]
    %v264 = vld [vmem:[#allocation5 + $0x24] sm:$0xf]
    %v265 = vld [vmem:[#allocation5 + $0x28] sm:$0xf]
    %v266 = vld [vmem:[#allocation5 + $0x2c] sm:$0xf]
    %v267 = vld [vmem:[#allocation5 + $0x30] sm:$0xf]
    %v268 = vld [vmem:[#allocation5 + $0x34] sm:$0xf]
    %v269 = vld [vmem:[#allocation5 + $0x38] sm:$0xf]
    %v270 = vld [vmem:[#allocation5 + $0x3c] sm:$0xf]
    %v271 = vld [vmem:[%s6] sm:$0x1]
    %v273 = vlaneseq
    %v274 = vshrl.u32 %v273, 7
    %v275 = vsub.s32 0, %v274
    %v276 = vrot.slane %v271, %v275
    %v294 = vunpack.c.l.b16 %v255
    %v295 = vunpack.c.l.b16 %v256
    %v296 = vunpack.c.l.b16 %v257
    %v297 = vunpack.c.l.b16 %v258
    %v298 = vunpack.c.l.b16 %v259
    %v299 = vunpack.c.l.b16 %v260
    %v300 = vunpack.c.l.b16 %v261
    %v301 = vunpack.c.l.b16 %v262
    %v302 = vunpack.c.l.b16 %v263
    %v303 = vunpack.c.l.b16 %v264
    %v304 = vunpack.c.l.b16 %v265
    %v305 = vunpack.c.l.b16 %v266
    %v306 = vunpack.c.l.b16 %v267
    %v307 = vunpack.c.l.b16 %v268
    %v308 = vunpack.c.l.b16 %v269
    %v309 = vunpack.c.l.b16 %v270
    %v310 = vpack.c.b16 %v295, %v294
    %v311 = vpack.c.b16 %v297, %v296
    %v312 = vpack.c.b16 %v299, %v298
    %v313 = vpack.c.b16 %v301, %v300
    %v314 = vpack.c.b16 %v303, %v302
    %v315 = vpack.c.b16 %v305, %v304
    %v316 = vpack.c.b16 %v307, %v306
    %v317 = vpack.c.b16 %v309, %v308
    %326 = vmatprep.subr.bf16.mxu0 0
    %327 = vmatpush1.bf16.msra.mxu0 %v310
    %328 = vmatprep.subr.bf16.mxu0 0
    %329 = vmatpush1.bf16.msra.mxu0 %v311
    %330 = vmatprep.subr.bf16.mxu0 0
    %331 = vmatpush1.bf16.msra.mxu0 %v312
    %332 = vmatprep.subr.bf16.mxu0 0
    %333 = vmatpush1.bf16.msra.mxu0 %v313
    %334 = vmatprep.subr.bf16.mxu0 0
    %335 = vmatpush1.bf16.msra.mxu0 %v314
    %336 = vmatprep.subr.bf16.mxu0 0
    %337 = vmatpush1.bf16.msra.mxu0 %v315
    %338 = vmatprep.subr.bf16.mxu0 0
    %339 = vmatpush1.bf16.msra.mxu0 %v316
    %340 = vmatprep.subr.bf16.mxu0 0
    %341 = vmatpush1.bf16.msra.mxu0 %v317
    %342 = vmatprep.subr.bf16.mxu0 0
    %343 = vmatpush1.bf16.msra.mxu0 0
    %344 = vmatprep.subr.bf16.mxu0 0
    %345 = vmatpush1.bf16.msra.mxu0 0
    %346 = vmatprep.subr.bf16.mxu0 0
    %347 = vmatpush1.bf16.msra.mxu0 0
    %348 = vmatprep.subr.bf16.mxu0 0
    %349 = vmatpush1.bf16.msra.mxu0 0
    %350 = vmatprep.subr.bf16.mxu0 0
    %351 = vmatpush1.bf16.msra.mxu0 0
    %352 = vmatprep.subr.bf16.mxu0 0
    %353 = vmatpush1.bf16.msra.mxu0 0
    %354 = vmatprep.subr.bf16.mxu0 0
    %355 = vmatpush1.bf16.msra.mxu0 0
    %356 = vmatprep.subr.bf16.mxu0 0
    %357 = vmatpush1.bf16.msra.mxu0 0
    %358 = vmatprep.mubr.bf16.mxu0 0
    %359 = vmatmul.mubr.bf16.gmra.mrb[0].mxu0 %v254
    %v360 = vpop.f32.mrb[0].mxu0
    %v361 = vadd.f32 %v276, %v360
    %v362 = vpop.f32.mrb[0].mxu0
    %v363 = vpop.f32.mrb[0].mxu0
    %v364 = vpop.f32.mrb[0].mxu0
    %365 = vdwg.mxu0
    %366 = vmax.xlane.f32.xlu0 %v361
    %v367 = vpop.xlane.xlu0 %366
    %v368 = vsub.f32 %v361, %v367
    %v369 = vmul.f32 %v368, 1.442695
    %v370 = vpow.pop %v369
    %371 = vadd.xlane.f32.xlu0 %v370
    %v372 = vpop.xlane.xlu0 %371
    %v373 = vrcp.pop %v372
    %v374 = vmul.f32 %v370, %v373
    %v375 = vpack.c.bf16 %v374, %v374
    %376 = vst [vmem:[#allocation7] sm:$0xf] %v375
    // Predicated region
    $region38: #{emg_forward.1} parent=1 // pred_check
      _
    $region39: #{emg_forward.1} parent=1 // pred_check_branch
      %378 = sbr.rel (0) target = $region41
    $region40: #{emg_forward.1} parent=1 // pred_region
      %s380 = ssub.s32 64, 64
      %381 = vsyncadd [#allocation4], %s380
      %s383 = sshll.u32 [#allocation7], 4
      %s384 = int_to_ptr.vmem [resolvable:$true] %s383
      %386 = dma.vmem_to_hbm [thread:$0]  %s384, 64, %s7, [#allocation4]
    $region41: #{emg_forward.1} parent=1 // pred_fallthru
      _
    // Predicated region
    $region42: #{emg_forward.1} parent=1 // pred_check
      _
    $region43: #{emg_forward.1} parent=1 // pred_check_branch
      %388 = sbr.rel (0) target = $region45
    $region44: #{emg_forward.1} parent=1 // pred_region
      %389 = dma.done [#allocation4], 64
    $region45: #{emg_forward.1} parent=1 // pred_fallthru
      _
    %390 = vsyncpa [#allocation3], 1
    %391 = vsyncpa [#allocation6], 1
    %392 = vsyncpa [#allocation4], 1

</llo_original>
